<compile_context>
chip_gen: v5e
topology: v5e:2x2
jax: 0.10.0
libtpu: 0.0.40
codegen_flags: <defaults>
</compile_context>

<pallas_src>
import jax
import jax.numpy as jnp
import numpy as np
from jax.experimental import pallas as pl
from jax.experimental.pallas import tpu as pltpu

LEAKY_SLOPE = 0.01               # F.leaky_relu default negative_slope
BN_EPS = 1e-5                    # nn.BatchNorm2d default eps
_VMEM_LIMIT = 32 * 1024 * 1024   # safe on v5e/v6e (128 MiB) and v7x (64 MiB)
_PAD8 = 8                        # sublane-aligned zero halo for in-kernel H pad


# ----------------------------------------------------------------------------
# Host-side weight packing (runs once, outside the jitted forward)
# ----------------------------------------------------------------------------

def _pack_weights(params, *, ksize, pad, ds_ksize, ds_stride, N, H, W):
    w1 = np.asarray(params["w1"], np.float32)     # (Cout, Cin, KH, KW)
    w2 = np.asarray(params["w2"], np.float32)     # (Cout, Cout, KH, KW)
    ws = np.asarray(params["ws"], np.float32)     # (Cout, Cin, 1, 1)
    bs = np.asarray(params["bs"], np.float32)
    wd = np.asarray(params["wd"], np.float32)     # (Cout, Cout, kd, kd)
    bd = np.asarray(params["bd"], np.float32)
    g1 = np.asarray(params["g1"], np.float32)
    be1 = np.asarray(params["be1"], np.float32)
    g2 = np.asarray(params["g2"], np.float32)
    be2 = np.asarray(params["be2"], np.float32)

    Cout, Cin, KH, KW = w1.shape
    OH, OW = H, W
    OHd = (OH - ds_ksize) // ds_stride + 1
    OWd = (OW - ds_ksize) // ds_stride + 1
    Lin, L, Ld = W * Cin, OW * Cout, OWd * Cout
    M, Md = N * OH, N * OHd

    # conv1 bands stacked over H-taps along K; skip conv occupies the second
    # Lout column block (non-zero only in the centre H-tap rows).
    # NOTE: conv1/conv2 biases are intentionally dropped - training-mode BN
    # mean subtraction cancels them exactly.
    w1t = np.transpose(w1, (2, 3, 1, 0))          # (KH, KW, Cin, Cout)
    wc1 = np.zeros((KH * Lin, 2 * L), np.float32)
    for di in range(KH):
        blk = np.zeros((Lin, L), np.float32)
        for dj in range(KW):
            blk += np.kron(np.eye(W, OW, k=pad - dj, dtype=np.float32),
                           w1t[di, dj])
        wc1[di * Lin:(di + 1) * Lin, :L] = blk
    wst = np.transpose(ws, (2, 3, 1, 0))[0, 0]    # (Cin, Cout)
    wc1[pad * Lin:(pad + 1) * Lin, L:] = np.kron(
        np.eye(W, OW, dtype=np.float32), wst)

    # conv2 bands (input lane layout is ow*Cout + c)
    w2t = np.transpose(w2, (2, 3, 1, 0))          # (KH, KW, Cout, Cout)
    wc2 = np.zeros((KH * L, L), np.float32)
    for di in range(KH):
        blk = np.zeros((L, L), np.float32)
        for dj in range(KW):
            blk += np.kron(np.eye(OW, OW, k=pad - dj, dtype=np.float32),
                           w2t[di, dj])
        wc2[di * L:(di + 1) * L, :] = blk

    # downsample conv: per-H-tap banded weight (handles W taps + channels) ...
    wdt = np.transpose(wd, (2, 3, 1, 0))          # (kd, kd, Cout, Cout)
    wdc = np.zeros((L, ds_ksize * Ld), np.float32)
    for i in range(ds_ksize):
        blk = np.zeros((L, Ld), np.float32)
        for j in range(ds_ksize):
            E = np.zeros((OW, OWd), np.float32)
            E[ds_stride * np.arange(OWd) + j, np.arange(OWd)] = 1.0
            blk += np.kron(E, wdt[i, j])
        wdc[:, i * Ld:(i + 1) * Ld] = blk

    # ... and a 0/1 row-selection matrix (handles H taps + H stride).
    sel = np.zeros((Md, ds_ksize * M), np.float32)
    for n in range(N):
        for ohd in range(OHd):
            for i in range(ds_ksize):
                sel[n * OHd + ohd,
                    i * M + n * OH + ds_stride * ohd + i] = 1.0

    # per-channel pooling matrix: folds per-lane sums to per-channel means and
    # broadcasts them straight back to the (ow, channel) lane layout.
    ch = np.arange(L) % Cout
    pmean = (ch[:, None] == ch[None, :]).astype(np.float32) / float(N * OH * OW)

    lane = lambda v, reps: np.tile(v, reps).reshape(1, -1).astype(np.float32)

    return dict(
        wc1=jnp.asarray(wc1, jnp.bfloat16),
        wc2=jnp.asarray(wc2, jnp.bfloat16),
        wdc=jnp.asarray(wdc, jnp.bfloat16),
        sel=jnp.asarray(sel, jnp.float32),
        pmean=jnp.asarray(pmean, jnp.float32),
        g1=jnp.asarray(lane(g1, OW)), be1=jnp.asarray(lane(be1, OW)),
        g2=jnp.asarray(lane(g2, OW)), be2=jnp.asarray(lane(be2, OW)),
        bs=jnp.asarray(lane(bs, OW)), bd=jnp.asarray(lane(bd, OWd)),
    )


# ----------------------------------------------------------------------------
# Fully fused Pallas kernel (single pallas_call for the whole block forward)
# ----------------------------------------------------------------------------

def _make_fused_call(*, N, H, W, Cin, Cout, ksize, pad, ds_ksize, ds_stride):
    KH = ksize
    Hp = H + 2 * pad
    OH, OW = H, W                       # same-size convs (2*pad == ksize-1)
    OHd = (OH - ds_ksize) // ds_stride + 1
    OWd = (OW - ds_ksize) // ds_stride + 1
    Lin = W * Cin                       # input lane width  (w, cin)
    L = OW * Cout                       # conv lane width   (ow, cout)
    Ld = OWd * Cout                     # ds-output lane width
    M = N * OH
    Md = N * OHd

    def kernel(x_ref, wc1_ref, wc2_ref, wdc_ref, sel_ref, pm_ref,
               g1_ref, be1_ref, g2_ref, be2_ref, bs_ref, bd_ref, out_ref):

        def bn_lrelu(y, g_lane, b_lane):
            # training-mode BatchNorm2d (biased variance) + LeakyReLU, all on
            # the (rows, ow*Cout) lane layout; per-channel fold + broadcast of
            # the statistics is one tiny f32 matmul with the pool matrix.
            s = jnp.sum(y, axis=0, keepdims=True)                  # (1, L)
            q = jnp.sum(y * y, axis=0, keepdims=True)              # (1, L)
            mean = jnp.dot(s, pm_ref[...],
                           preferred_element_type=jnp.float32)     # E[x]
            msq = jnp.dot(q, pm_ref[...],
                          preferred_element_type=jnp.float32)      # E[x^2]
            var = jnp.maximum(msq - mean * mean, 0.0)              # clamp
            scale = g_lane * jax.lax.rsqrt(var + BN_EPS)
            shift = b_lane - mean * scale
            z = y * scale + shift
            return jnp.where(z >= 0, z, LEAKY_SLOPE * z)

        # ---- conv1 (+ fused 1x1 skip): ONE MXU matmul, M=N*OH, K=KH*W*Cin.
        xv = x_ref[...]                                            # (N*Hp, Lin)
        rows = []
        for n in range(N):
            taps = [xv[n * Hp + di: n * Hp + di + OH, :] for di in range(KH)]
            rows.append(jnp.concatenate(taps, axis=1) if KH > 1 else taps[0])
        xs1 = jnp.concatenate(rows, axis=0) if N > 1 else rows[0]
        xs1 = xs1.astype(jnp.bfloat16)                             # single hoisted cast
        y1sk = jnp.dot(xs1, wc1_ref[...],
                       preferred_element_type=jnp.float32)         # (M, 2L)
        y1 = y1sk[:, :L]                                           # conv1 (bias cancelled by BN)
        skip = y1sk[:, L:] + bs_ref[...]                           # 1x1 skip conv (+ bias)

        x11 = bn_lrelu(y1, g1_ref[...], be1_ref[...])              # (M, L) f32

        # ---- conv2: H halo via sublane-aligned 8-row zero blocks, then the
        #      same banded single-matmul formulation (K = KH*OW*Cout).
        z8 = jnp.zeros((_PAD8, L), jnp.float32)
        rows2 = []
        for n in range(N):
            xi = jnp.concatenate([z8, x11[n * OH:(n + 1) * OH, :], z8], axis=0)
            taps = [xi[_PAD8 - pad + di: _PAD8 - pad + di + OH, :]
                    for di in range(KH)]
            rows2.append(jnp.concatenate(taps, axis=1) if KH > 1 else taps[0])
        xs2 = jnp.concatenate(rows2, axis=0) if N > 1 else rows2[0]
        xs2 = xs2.astype(jnp.bfloat16)
        y2 = jnp.dot(xs2, wc2_ref[...],
                     preferred_element_type=jnp.float32)           # (M, L)

        x12 = bn_lrelu(y2, g2_ref[...], be2_ref[...]) + skip       # (M, L) f32

        # ---- downsample conv: banded bf16 weight (W taps + channels) followed
        #      by a tiny 0/1 selection matmul (H taps + stride); lane-dense.
        t = jnp.dot(x12.astype(jnp.bfloat16), wdc_ref[...],
                    preferred_element_type=jnp.float32)            # (M, ds_k*Ld)
        parts = [t[:, i * Ld:(i + 1) * Ld] for i in range(ds_ksize)]
        tstack = jnp.concatenate(parts, axis=0) if ds_ksize > 1 else parts[0]
        yd = jnp.dot(sel_ref[...], tstack,
                     preferred_element_type=jnp.float32)           # (Md, Ld)
        out_ref[...] = yd + bd_ref[...]

    def spec(shape):
        return pl.BlockSpec(shape, lambda i: (0, 0))

    return pl.pallas_call(
        kernel,
        out_shape=jax.ShapeDtypeStruct((Md, Ld), jnp.float32),
        grid=(1,),                                  # whole batch in one step
        in_specs=[spec((N * Hp, Lin)),
                  spec((KH * Lin, 2 * L)),
                  spec((KH * L, L)),
                  spec((L, ds_ksize * Ld)),
                  spec((Md, ds_ksize * M)),
                  spec((L, L)),
                  spec((1, L)), spec((1, L)),
                  spec((1, L)), spec((1, L)),
                  spec((1, L)), spec((1, Ld))],
        out_specs=spec((Md, Ld)),
        compiler_params=pltpu.CompilerParams(
            dimension_semantics=("arbitrary",),
            vmem_limit_bytes=_VMEM_LIMIT),
    )


# ----------------------------------------------------------------------------
# Public wrapper
# ----------------------------------------------------------------------------

def build_block_forward(params, *, ksize, pad, ds_ksize, ds_stride, N, H, W):
    """Pack weights once (host/numpy) and return a jitted forward(x_nchw)."""
    Cout, Cin = params["w1"].shape[0], params["w1"].shape[1]
    assert 2 * pad == ksize - 1, "block requires same-size convs (x12 += skip(x))"
    OH, OW = H, W
    OHd = (OH - ds_ksize) // ds_stride + 1
    OWd = (OW - ds_ksize) // ds_stride + 1
    Hp = H + 2 * pad

    packed = _pack_weights(params, ksize=ksize, pad=pad, ds_ksize=ds_ksize,
                           ds_stride=ds_stride, N=N, H=H, W=W)
    fused = _make_fused_call(N=N, H=H, W=W, Cin=Cin, Cout=Cout, ksize=ksize,
                             pad=pad, ds_ksize=ds_ksize, ds_stride=ds_stride)

    @jax.jit
    def _forward(x_nchw, pk):
        x = jnp.transpose(x_nchw, (0, 2, 3, 1)).astype(jnp.float32)   # NHWC
        x = jnp.pad(x, ((0, 0), (pad, pad), (0, 0), (0, 0)))          # H halo only
        x2 = x.reshape(N * Hp, W * Cin)
        yd = fused(x2, pk["wc1"], pk["wc2"], pk["wdc"], pk["sel"], pk["pmean"],
                   pk["g1"], pk["be1"], pk["g2"], pk["be2"], pk["bs"], pk["bd"])
        xp = yd.reshape(N, OHd, OWd, Cout).transpose(0, 3, 1, 2)      # NCHW
        return xp

    x12_size = (N, Cout, OH, OW)

    def forward(x_nchw):
        xp = _forward(x_nchw, packed)
        return xp, xp, x12_size

    return forward


# ----------------------------------------------------------------------------
# Deterministic parameter init (PyTorch-like uniform(-1/sqrt(fan_in), ...))
# ----------------------------------------------------------------------------

def init_params(key, inp, out, ksize, ds_ksize):
    def conv_init(k, o, i, kh, kw):
        bound = 1.0 / np.sqrt(i * kh * kw)
        kw_, kb_ = jax.random.split(k)
        w = jax.random.uniform(kw_, (o, i, kh, kw), jnp.float32, -bound, bound)
        b = jax.random.uniform(kb_, (o,), jnp.float32, -bound, bound)
        return w, b

    keys = jax.random.split(key, 8)
    w1, b1 = conv_init(keys[0], out, inp, ksize, ksize)
    w2, b2 = conv_init(keys[1], out, out, ksize, ksize)
    ws, bs = conv_init(keys[2], out, inp, 1, 1)
    wd, bd = conv_init(keys[3], out, out, ds_ksize, ds_ksize)
    g1 = 1.0 + 0.1 * jax.random.normal(keys[4], (out,), jnp.float32)
    be1 = 0.1 * jax.random.normal(keys[5], (out,), jnp.float32)
    g2 = 1.0 + 0.1 * jax.random.normal(keys[6], (out,), jnp.float32)
    be2 = 0.1 * jax.random.normal(keys[7], (out,), jnp.float32)
    return dict(w1=w1, b1=b1, w2=w2, b2=b2, ws=ws, bs=bs, wd=wd, bd=bd,
                g1=g1, be1=be1, g2=g2, be2=be2)


# ----------------------------------------------------------------------------
# Pure-JAX reference (mirrors the PyTorch forward) for a sanity check
# ----------------------------------------------------------------------------

def reference_forward(x, p, pad, ds_stride):
    HP = jax.lax.Precision.HIGHEST

    def conv(x, w, b, stride, padv):
        y = jax.lax.conv_general_dilated(
            x, w, (stride, stride), [(padv, padv), (padv, padv)],
            dimension_numbers=("NCHW", "OIHW", "NCHW"), precision=HP)
        return y + b[None, :, None, None]

    def bn(x, g, bta):
        mean = jnp.mean(x, axis=(0, 2, 3), keepdims=True)
        var = jnp.mean((x - mean) ** 2, axis=(0, 2, 3), keepdims=True)
        return ((x - mean) / jnp.sqrt(var + BN_EPS)
                * g[None, :, None, None] + bta[None, :, None, None])

    lrelu = lambda v: jnp.where(v >= 0, v, LEAKY_SLOPE * v)
    x11 = lrelu(bn(conv(x, p["w1"], p["b1"], 1, pad), p["g1"], p["be1"]))
    x12 = (lrelu(bn(conv(x11, p["w2"], p["b2"], 1, pad), p["g2"], p["be2"]))
           + conv(x, p["ws"], p["bs"], 1, 0))
    xp = conv(x12, p["wd"], p["bd"], ds_stride, 0)
    return xp, x12


# ----------------------------------------------------------------------------

if __name__ == "__main__":
    # block(inp=4, out=8, ksize=3, pad=1, ds_ksize=2, ds_stride=2)
    inp, out, ksize, pad, ds_ksize, ds_stride = 4, 8, 3, 1, 2, 2
    N, H, W = 2, 16, 16

    key = jax.random.PRNGKey(0)
    kx, kp = jax.random.split(key)
    x = jax.random.normal(kx, (N, inp, H, W), jnp.float32)
    params = init_params(kp, inp, out, ksize, ds_ksize)

    forward = build_block_forward(params, ksize=ksize, pad=pad,
                                  ds_ksize=ds_ksize, ds_stride=ds_stride,
                                  N=N, H=H, W=W)
    xp, xp_again, x12_size = forward(x)
    xp = jax.block_until_ready(xp)

    # sanity check against the pure-JAX reference of the PyTorch forward
    # (tolerance accounts for bf16 MXU operands in the Pallas path)
    xp_ref, x12_ref = reference_forward(x, params, pad, ds_stride)
    assert xp.shape == xp_ref.shape, (xp.shape, xp_ref.shape)
    assert tuple(x12_size) == tuple(x12_ref.shape), (x12_size, x12_ref.shape)
    np.testing.assert_allclose(np.asarray(xp), np.asarray(xp_ref),
                               rtol=5e-2, atol=5e-2)

    print("KERNEL_OK")
</pallas_src>

<mosaic_0001>
module attributes {stable_mosaic.version = 11 : i64} {
  func.func @kernel(%arg0: i32, %arg1: memref<36x64xf32, #tpu.memory_space<vmem>>, %arg2: memref<192x256xbf16, #tpu.memory_space<vmem>>, %arg3: memref<384x128xbf16, #tpu.memory_space<vmem>>, %arg4: memref<128x128xbf16, #tpu.memory_space<vmem>>, %arg5: memref<16x64xf32, #tpu.memory_space<vmem>>, %arg6: memref<128x128xf32, #tpu.memory_space<vmem>>, %arg7: memref<1x128xf32, #tpu.memory_space<vmem>>, %arg8: memref<1x128xf32, #tpu.memory_space<vmem>>, %arg9: memref<1x128xf32, #tpu.memory_space<vmem>>, %arg10: memref<1x128xf32, #tpu.memory_space<vmem>>, %arg11: memref<1x128xf32, #tpu.memory_space<vmem>>, %arg12: memref<1x64xf32, #tpu.memory_space<vmem>>, %arg13: memref<16x64xf32, #tpu.memory_space<vmem>>) attributes {dimension_semantics = [#tpu.dimension_semantics<arbitrary>], iteration_bounds = array<i64: 1>, scalar_prefetch = 0 : i64, scratch_operands = 0 : i64, tpu.core_type = #tpu.core_type<tc>, window_params = [{pipeline_mode = #tpu.pipeline_mode<synchronous>, transform_indices = @transform_0, window_bounds = array<i64: 36, 64>}, {pipeline_mode = #tpu.pipeline_mode<synchronous>, transform_indices = @transform_1, window_bounds = array<i64: 192, 256>}, {pipeline_mode = #tpu.pipeline_mode<synchronous>, transform_indices = @transform_2, window_bounds = array<i64: 384, 128>}, {pipeline_mode = #tpu.pipeline_mode<synchronous>, transform_indices = @transform_3, window_bounds = array<i64: 128, 128>}, {pipeline_mode = #tpu.pipeline_mode<synchronous>, transform_indices = @transform_4, window_bounds = array<i64: 16, 64>}, {pipeline_mode = #tpu.pipeline_mode<synchronous>, transform_indices = @transform_5, window_bounds = array<i64: 128, 128>}, {pipeline_mode = #tpu.pipeline_mode<synchronous>, transform_indices = @transform_6, window_bounds = array<i64: 1, 128>}, {pipeline_mode = #tpu.pipeline_mode<synchronous>, transform_indices = @transform_7, window_bounds = array<i64: 1, 128>}, {pipeline_mode = #tpu.pipeline_mode<synchronous>, transform_indices = @transform_8, window_bounds = array<i64: 1, 128>}, {pipeline_mode = #tpu.pipeline_mode<synchronous>, transform_indices = @transform_9, window_bounds = array<i64: 1, 128>}, {pipeline_mode = #tpu.pipeline_mode<synchronous>, transform_indices = @transform_10, window_bounds = array<i64: 1, 128>}, {pipeline_mode = #tpu.pipeline_mode<synchronous>, transform_indices = @transform_11, window_bounds = array<i64: 1, 64>}, {pipeline_mode = #tpu.pipeline_mode<synchronous>, transform_indices = @transform_12, window_bounds = array<i64: 16, 64>}]} {
    %c0 = arith.constant 0 : index
    %c0_0 = arith.constant 0 : index
    %0 = vector.load %arg1[%c0, %c0_0] : memref<36x64xf32, #tpu.memory_space<vmem>>, vector<36x64xf32>
    %1 = vector.extract_strided_slice %0 {offsets = [0, 0], sizes = [16, 64], strides = [1, 1]} : vector<36x64xf32> to vector<16x64xf32>
    %2 = vector.extract_strided_slice %0 {offsets = [1, 0], sizes = [16, 64], strides = [1, 1]} : vector<36x64xf32> to vector<16x64xf32>
    %3 = vector.extract_strided_slice %0 {offsets = [2, 0], sizes = [16, 64], strides = [1, 1]} : vector<36x64xf32> to vector<16x64xf32>
    %4 = tpu.concatenate %1, %2, %3 in 1 : vector<16x64xf32>, vector<16x64xf32>, vector<16x64xf32> -> vector<16x192xf32>
    %5 = vector.extract_strided_slice %0 {offsets = [18, 0], sizes = [16, 64], strides = [1, 1]} : vector<36x64xf32> to vector<16x64xf32>
    %6 = vector.extract_strided_slice %0 {offsets = [19, 0], sizes = [16, 64], strides = [1, 1]} : vector<36x64xf32> to vector<16x64xf32>
    %7 = vector.extract_strided_slice %0 {offsets = [20, 0], sizes = [16, 64], strides = [1, 1]} : vector<36x64xf32> to vector<16x64xf32>
    %8 = tpu.concatenate %5, %6, %7 in 1 : vector<16x64xf32>, vector<16x64xf32>, vector<16x64xf32> -> vector<16x192xf32>
    %9 = tpu.concatenate %4, %8 in 0 : vector<16x192xf32>, vector<16x192xf32> -> vector<32x192xf32>
    %10 = arith.truncf %9 : vector<32x192xf32> to vector<32x192xbf16>
    %c0_1 = arith.constant 0 : index
    %c0_2 = arith.constant 0 : index
    %11 = vector.load %arg2[%c0_1, %c0_2] : memref<192x256xbf16, #tpu.memory_space<vmem>>, vector<192x256xbf16>
    %cst = arith.constant dense<0.000000e+00> : vector<32x256xf32>
    %12 = tpu.matmul %10, %11, %cst {dimension_numbers = #tpu.dot_dimension_numbers<[1], [0], [0], [1], [0, 0, 1, 1], [], []>} : vector<32x192xbf16>, vector<192x256xbf16>, vector<32x256xf32> -> vector<32x256xf32>
    %13 = vector.extract_strided_slice %12 {offsets = [0, 0], sizes = [32, 128], strides = [1, 1]} : vector<32x256xf32> to vector<32x128xf32>
    %14 = vector.extract_strided_slice %12 {offsets = [0, 128], sizes = [32, 128], strides = [1, 1]} : vector<32x256xf32> to vector<32x128xf32>
    %c0_3 = arith.constant 0 : index
    %c0_4 = arith.constant 0 : index
    %15 = vector.load %arg11[%c0_3, %c0_4] : memref<1x128xf32, #tpu.memory_space<vmem>>, vector<1x128xf32>
    %16 = vector.broadcast %15 : vector<1x128xf32> to vector<32x128xf32>
    %17 = arith.addf %14, %16 : vector<32x128xf32>
    %c0_5 = arith.constant 0 : index
    %c0_6 = arith.constant 0 : index
    %18 = vector.load %arg7[%c0_5, %c0_6] : memref<1x128xf32, #tpu.memory_space<vmem>>, vector<1x128xf32>
    %c0_7 = arith.constant 0 : index
    %c0_8 = arith.constant 0 : index
    %19 = vector.load %arg8[%c0_7, %c0_8] : memref<1x128xf32, #tpu.memory_space<vmem>>, vector<1x128xf32>
    %cst_9 = arith.constant dense<0.000000e+00> : vector<128xf32>
    %20 = vector.multi_reduction <add>, %13, %cst_9 [0] : vector<32x128xf32> to vector<128xf32>
    %21 = vector.shape_cast %20 : vector<128xf32> to vector<1x128xf32>
    %22 = arith.mulf %13, %13 : vector<32x128xf32>
    %cst_10 = arith.constant dense<0.000000e+00> : vector<128xf32>
    %23 = vector.multi_reduction <add>, %22, %cst_10 [0] : vector<32x128xf32> to vector<128xf32>
    %24 = vector.shape_cast %23 : vector<128xf32> to vector<1x128xf32>
    %c0_11 = arith.constant 0 : index
    %c0_12 = arith.constant 0 : index
    %25 = vector.load %arg6[%c0_11, %c0_12] : memref<128x128xf32, #tpu.memory_space<vmem>>, vector<128x128xf32>
    %cst_13 = arith.constant dense<0.000000e+00> : vector<1x128xf32>
    %26 = tpu.matmul %21, %25, %cst_13 {dimension_numbers = #tpu.dot_dimension_numbers<[1], [0], [0], [1], [0, 0, 1, 1], [], []>} : vector<1x128xf32>, vector<128x128xf32>, vector<1x128xf32> -> vector<1x128xf32>
    %c0_14 = arith.constant 0 : index
    %c0_15 = arith.constant 0 : index
    %27 = vector.load %arg6[%c0_14, %c0_15] : memref<128x128xf32, #tpu.memory_space<vmem>>, vector<128x128xf32>
    %cst_16 = arith.constant dense<0.000000e+00> : vector<1x128xf32>
    %28 = tpu.matmul %24, %27, %cst_16 {dimension_numbers = #tpu.dot_dimension_numbers<[1], [0], [0], [1], [0, 0, 1, 1], [], []>} : vector<1x128xf32>, vector<128x128xf32>, vector<1x128xf32> -> vector<1x128xf32>
    %29 = arith.mulf %26, %26 : vector<1x128xf32>
    %30 = arith.subf %28, %29 : vector<1x128xf32>
    %cst_17 = arith.constant 0.000000e+00 : f32
    %31 = vector.broadcast %cst_17 : f32 to vector<1x128xf32>
    %32 = arith.maximumf %30, %31 : vector<1x128xf32>
    %cst_18 = arith.constant 9.99999974E-6 : f32
    %33 = vector.broadcast %cst_18 : f32 to vector<1x128xf32>
    %34 = arith.addf %32, %33 : vector<1x128xf32>
    %35 = math.rsqrt %34 : vector<1x128xf32>
    %36 = arith.mulf %18, %35 : vector<1x128xf32>
    %37 = arith.mulf %26, %36 : vector<1x128xf32>
    %38 = arith.subf %19, %37 : vector<1x128xf32>
    %39 = vector.broadcast %36 : vector<1x128xf32> to vector<32x128xf32>
    %40 = arith.mulf %13, %39 : vector<32x128xf32>
    %41 = vector.broadcast %38 : vector<1x128xf32> to vector<32x128xf32>
    %42 = arith.addf %40, %41 : vector<32x128xf32>
    %cst_19 = arith.constant 0.000000e+00 : f32
    %43 = vector.broadcast %cst_19 : f32 to vector<32x128xf32>
    %44 = arith.cmpf oge, %42, %43 : vector<32x128xf32>
    %cst_20 = arith.constant 0.00999999977 : f32
    %45 = vector.broadcast %cst_20 : f32 to vector<32x128xf32>
    %46 = arith.mulf %45, %42 : vector<32x128xf32>
    %47 = arith.select %44, %42, %46 : vector<32x128xi1>, vector<32x128xf32>
    %cst_21 = arith.constant 0.000000e+00 : f32
    %48 = vector.broadcast %cst_21 : f32 to vector<8x128xf32>
    %49 = vector.extract_strided_slice %47 {offsets = [0, 0], sizes = [16, 128], strides = [1, 1]} : vector<32x128xf32> to vector<16x128xf32>
    %50 = tpu.concatenate %48, %49, %48 in 0 : vector<8x128xf32>, vector<16x128xf32>, vector<8x128xf32> -> vector<32x128xf32>
    %51 = vector.extract_strided_slice %50 {offsets = [7, 0], sizes = [16, 128], strides = [1, 1]} : vector<32x128xf32> to vector<16x128xf32>
    %52 = vector.extract_strided_slice %50 {offsets = [8, 0], sizes = [16, 128], strides = [1, 1]} : vector<32x128xf32> to vector<16x128xf32>
    %53 = vector.extract_strided_slice %50 {offsets = [9, 0], sizes = [16, 128], strides = [1, 1]} : vector<32x128xf32> to vector<16x128xf32>
    %54 = tpu.concatenate %51, %52, %53 in 1 : vector<16x128xf32>, vector<16x128xf32>, vector<16x128xf32> -> vector<16x384xf32>
    %55 = vector.extract_strided_slice %47 {offsets = [16, 0], sizes = [16, 128], strides = [1, 1]} : vector<32x128xf32> to vector<16x128xf32>
    %56 = tpu.concatenate %48, %55, %48 in 0 : vector<8x128xf32>, vector<16x128xf32>, vector<8x128xf32> -> vector<32x128xf32>
    %57 = vector.extract_strided_slice %56 {offsets = [7, 0], sizes = [16, 128], strides = [1, 1]} : vector<32x128xf32> to vector<16x128xf32>
    %58 = vector.extract_strided_slice %56 {offsets = [8, 0], sizes = [16, 128], strides = [1, 1]} : vector<32x128xf32> to vector<16x128xf32>
    %59 = vector.extract_strided_slice %56 {offsets = [9, 0], sizes = [16, 128], strides = [1, 1]} : vector<32x128xf32> to vector<16x128xf32>
    %60 = tpu.concatenate %57, %58, %59 in 1 : vector<16x128xf32>, vector<16x128xf32>, vector<16x128xf32> -> vector<16x384xf32>
    %61 = tpu.concatenate %54, %60 in 0 : vector<16x384xf32>, vector<16x384xf32> -> vector<32x384xf32>
    %62 = arith.truncf %61 : vector<32x384xf32> to vector<32x384xbf16>
    %c0_22 = arith.constant 0 : index
    %c0_23 = arith.constant 0 : index
    %63 = vector.load %arg3[%c0_22, %c0_23] : memref<384x128xbf16, #tpu.memory_space<vmem>>, vector<384x128xbf16>
    %cst_24 = arith.constant dense<0.000000e+00> : vector<32x128xf32>
    %64 = tpu.matmul %62, %63, %cst_24 {dimension_numbers = #tpu.dot_dimension_numbers<[1], [0], [0], [1], [0, 0, 1, 1], [], []>} : vector<32x384xbf16>, vector<384x128xbf16>, vector<32x128xf32> -> vector<32x128xf32>
    %c0_25 = arith.constant 0 : index
    %c0_26 = arith.constant 0 : index
    %65 = vector.load %arg9[%c0_25, %c0_26] : memref<1x128xf32, #tpu.memory_space<vmem>>, vector<1x128xf32>
    %c0_27 = arith.constant 0 : index
    %c0_28 = arith.constant 0 : index
    %66 = vector.load %arg10[%c0_27, %c0_28] : memref<1x128xf32, #tpu.memory_space<vmem>>, vector<1x128xf32>
    %cst_29 = arith.constant dense<0.000000e+00> : vector<128xf32>
    %67 = vector.multi_reduction <add>, %64, %cst_29 [0] : vector<32x128xf32> to vector<128xf32>
    %68 = vector.shape_cast %67 : vector<128xf32> to vector<1x128xf32>
    %69 = arith.mulf %64, %64 : vector<32x128xf32>
    %cst_30 = arith.constant dense<0.000000e+00> : vector<128xf32>
    %70 = vector.multi_reduction <add>, %69, %cst_30 [0] : vector<32x128xf32> to vector<128xf32>
    %71 = vector.shape_cast %70 : vector<128xf32> to vector<1x128xf32>
    %c0_31 = arith.constant 0 : index
    %c0_32 = arith.constant 0 : index
    %72 = vector.load %arg6[%c0_31, %c0_32] : memref<128x128xf32, #tpu.memory_space<vmem>>, vector<128x128xf32>
    %cst_33 = arith.constant dense<0.000000e+00> : vector<1x128xf32>
    %73 = tpu.matmul %68, %72, %cst_33 {dimension_numbers = #tpu.dot_dimension_numbers<[1], [0], [0], [1], [0, 0, 1, 1], [], []>} : vector<1x128xf32>, vector<128x128xf32>, vector<1x128xf32> -> vector<1x128xf32>
    %c0_34 = arith.constant 0 : index
    %c0_35 = arith.constant 0 : index
    %74 = vector.load %arg6[%c0_34, %c0_35] : memref<128x128xf32, #tpu.memory_space<vmem>>, vector<128x128xf32>
    %cst_36 = arith.constant dense<0.000000e+00> : vector<1x128xf32>
    %75 = tpu.matmul %71, %74, %cst_36 {dimension_numbers = #tpu.dot_dimension_numbers<[1], [0], [0], [1], [0, 0, 1, 1], [], []>} : vector<1x128xf32>, vector<128x128xf32>, vector<1x128xf32> -> vector<1x128xf32>
    %76 = arith.mulf %73, %73 : vector<1x128xf32>
    %77 = arith.subf %75, %76 : vector<1x128xf32>
    %cst_37 = arith.constant 0.000000e+00 : f32
    %78 = vector.broadcast %cst_37 : f32 to vector<1x128xf32>
    %79 = arith.maximumf %77, %78 : vector<1x128xf32>
    %cst_38 = arith.constant 9.99999974E-6 : f32
    %80 = vector.broadcast %cst_38 : f32 to vector<1x128xf32>
    %81 = arith.addf %79, %80 : vector<1x128xf32>
    %82 = math.rsqrt %81 : vector<1x128xf32>
    %83 = arith.mulf %65, %82 : vector<1x128xf32>
    %84 = arith.mulf %73, %83 : vector<1x128xf32>
    %85 = arith.subf %66, %84 : vector<1x128xf32>
    %86 = vector.broadcast %83 : vector<1x128xf32> to vector<32x128xf32>
    %87 = arith.mulf %64, %86 : vector<32x128xf32>
    %88 = vector.broadcast %85 : vector<1x128xf32> to vector<32x128xf32>
    %89 = arith.addf %87, %88 : vector<32x128xf32>
    %cst_39 = arith.constant 0.000000e+00 : f32
    %90 = vector.broadcast %cst_39 : f32 to vector<32x128xf32>
    %91 = arith.cmpf oge, %89, %90 : vector<32x128xf32>
    %cst_40 = arith.constant 0.00999999977 : f32
    %92 = vector.broadcast %cst_40 : f32 to vector<32x128xf32>
    %93 = arith.mulf %92, %89 : vector<32x128xf32>
    %94 = arith.select %91, %89, %93 : vector<32x128xi1>, vector<32x128xf32>
    %95 = arith.addf %94, %17 : vector<32x128xf32>
    %96 = arith.truncf %95 : vector<32x128xf32> to vector<32x128xbf16>
    %c0_41 = arith.constant 0 : index
    %c0_42 = arith.constant 0 : index
    %97 = vector.load %arg4[%c0_41, %c0_42] : memref<128x128xbf16, #tpu.memory_space<vmem>>, vector<128x128xbf16>
    %cst_43 = arith.constant dense<0.000000e+00> : vector<32x128xf32>
    %98 = tpu.matmul %96, %97, %cst_43 {dimension_numbers = #tpu.dot_dimension_numbers<[1], [0], [0], [1], [0, 0, 1, 1], [], []>} : vector<32x128xbf16>, vector<128x128xbf16>, vector<32x128xf32> -> vector<32x128xf32>
    %99 = vector.extract_strided_slice %98 {offsets = [0, 0], sizes = [32, 64], strides = [1, 1]} : vector<32x128xf32> to vector<32x64xf32>
    %100 = vector.extract_strided_slice %98 {offsets = [0, 64], sizes = [32, 64], strides = [1, 1]} : vector<32x128xf32> to vector<32x64xf32>
    %101 = tpu.concatenate %99, %100 in 0 : vector<32x64xf32>, vector<32x64xf32> -> vector<64x64xf32>
    %c0_44 = arith.constant 0 : index
    %c0_45 = arith.constant 0 : index
    %102 = vector.load %arg5[%c0_44, %c0_45] : memref<16x64xf32, #tpu.memory_space<vmem>>, vector<16x64xf32>
    %cst_46 = arith.constant dense<0.000000e+00> : vector<16x64xf32>
    %103 = tpu.matmul %102, %101, %cst_46 {dimension_numbers = #tpu.dot_dimension_numbers<[1], [0], [0], [1], [0, 0, 1, 1], [], []>} : vector<16x64xf32>, vector<64x64xf32>, vector<16x64xf32> -> vector<16x64xf32>
    %c0_47 = arith.constant 0 : index
    %c0_48 = arith.constant 0 : index
    %104 = vector.load %arg12[%c0_47, %c0_48] : memref<1x64xf32, #tpu.memory_space<vmem>>, vector<1x64xf32>
    %105 = vector.broadcast %104 : vector<1x64xf32> to vector<16x64xf32>
    %106 = arith.addf %103, %105 : vector<16x64xf32>
    %c0_49 = arith.constant 0 : index
    %c0_50 = arith.constant 0 : index
    %107 = vector.load %arg13[%c0_49, %c0_50] : memref<16x64xf32, #tpu.memory_space<vmem>>, vector<16x64xf32>
    tpu.vector_store %arg13[%c0_49, %c0_50], %106 {strides = array<i32>} : memref<16x64xf32, #tpu.memory_space<vmem>>, vector<16x64xf32>,
    return
  }
  func.func @transform_0(%arg0: i32) -> (i32, i32) {
    %c0_i32 = arith.constant 0 : i32
    %c0_i32_0 = arith.constant 0 : i32
    %c0_i32_1 = arith.constant 0 : i32
    return %c0_i32, %c0_i32_0 : i32, i32
  }
  func.func @transform_1(%arg0: i32) -> (i32, i32) {
    %c0_i32 = arith.constant 0 : i32
    %c0_i32_0 = arith.constant 0 : i32
    %c0_i32_1 = arith.constant 0 : i32
    return %c0_i32, %c0_i32_0 : i32, i32
  }
  func.func @transform_2(%arg0: i32) -> (i32, i32) {
    %c0_i32 = arith.constant 0 : i32
    %c0_i32_0 = arith.constant 0 : i32
    %c0_i32_1 = arith.constant 0 : i32
    return %c0_i32, %c0_i32_0 : i32, i32
  }
  func.func @transform_3(%arg0: i32) -> (i32, i32) {
    %c0_i32 = arith.constant 0 : i32
    %c0_i32_0 = arith.constant 0 : i32
    %c0_i32_1 = arith.constant 0 : i32
    return %c0_i32, %c0_i32_0 : i32, i32
  }
  func.func @transform_4(%arg0: i32) -> (i32, i32) {
    %c0_i32 = arith.constant 0 : i32
    %c0_i32_0 = arith.constant 0 : i32
    %c0_i32_1 = arith.constant 0 : i32
    return %c0_i32, %c0_i32_0 : i32, i32
  }
  func.func @transform_5(%arg0: i32) -> (i32, i32) {
    %c0_i32 = arith.constant 0 : i32
    %c0_i32_0 = arith.constant 0 : i32
    %c0_i32_1 = arith.constant 0 : i32
    return %c0_i32, %c0_i32_0 : i32, i32
  }
  func.func @transform_6(%arg0: i32) -> (i32, i32) {
    %c0_i32 = arith.constant 0 : i32
    %c0_i32_0 = arith.constant 0 : i32
    %c0_i32_1 = arith.constant 0 : i32
    return %c0_i32, %c0_i32_0 : i32, i32
  }
  func.func @transform_7(%arg0: i32) -> (i32, i32) {
    %c0_i32 = arith.constant 0 : i32
    %c0_i32_0 = arith.constant 0 : i32
    %c0_i32_1 = arith.constant 0 : i32
    return %c0_i32, %c0_i32_0 : i32, i32
  }
  func.func @transform_8(%arg0: i32) -> (i32, i32) {
    %c0_i32 = arith.constant 0 : i32
    %c0_i32_0 = arith.constant 0 : i32
    %c0_i32_1 = arith.constant 0 : i32
    return %c0_i32, %c0_i32_0 : i32, i32
  }
  func.func @transform_9(%arg0: i32) -> (i32, i32) {
    %c0_i32 = arith.constant 0 : i32
    %c0_i32_0 = arith.constant 0 : i32
    %c0_i32_1 = arith.constant 0 : i32
    return %c0_i32, %c0_i32_0 : i32, i32
  }
  func.func @transform_10(%arg0: i32) -> (i32, i32) {
    %c0_i32 = arith.constant 0 : i32
    %c0_i32_0 = arith.constant 0 : i32
    %c0_i32_1 = arith.constant 0 : i32
    return %c0_i32, %c0_i32_0 : i32, i32
  }
  func.func @transform_11(%arg0: i32) -> (i32, i32) {
    %c0_i32 = arith.constant 0 : i32
    %c0_i32_0 = arith.constant 0 : i32
    %c0_i32_1 = arith.constant 0 : i32
    return %c0_i32, %c0_i32_0 : i32, i32
  }
  func.func @transform_12(%arg0: i32) -> (i32, i32) {
    %c0_i32 = arith.constant 0 : i32
    %c0_i32_0 = arith.constant 0 : i32
    %c0_i32_1 = arith.constant 0 : i32
    return %c0_i32, %c0_i32_0 : i32, i32
  }
}

</mosaic_0001>

<llo_original>
// kernel: _forward.1
$region0: #{_forward.1}
  #allocation0 [shape = 'u32[]', space=smem, size = 0x4, offset = 0x4, fixed_abs, tag = 'smem constant byte address 0x4 - core index']
  #allocation1 [shape = 'u32[72,128]{1,0:T(1,128)}', space=vmem, size = 0x9000, scoped, tag = 'internal scratch']
  %s0 = inlined_call_operand.vmem [shape: f32[36,64], index: 0, kind: input, shape index: {}]
  %s1 = inlined_call_operand.vmem [shape: bf16[192,256], index: 1, kind: input, shape index: {}]
  %s2 = inlined_call_operand.vmem [shape: bf16[384,128], index: 2, kind: input, shape index: {}]
  %s3 = inlined_call_operand.vmem [shape: bf16[128,128], index: 3, kind: input, shape index: {}]
  %s4 = inlined_call_operand.vmem [shape: f32[16,64], index: 4, kind: input, shape index: {}]
  %s5 = inlined_call_operand.vmem [shape: f32[128,128], index: 5, kind: input, shape index: {}]
  %s6 = inlined_call_operand.vmem [shape: f32[1,128], index: 6, kind: input, shape index: {}]
  %s7 = inlined_call_operand.vmem [shape: f32[1,128], index: 7, kind: input, shape index: {}]
  %s8 = inlined_call_operand.vmem [shape: f32[1,128], index: 8, kind: input, shape index: {}]
  %s9 = inlined_call_operand.vmem [shape: f32[1,128], index: 9, kind: input, shape index: {}]
  %s10 = inlined_call_operand.vmem [shape: f32[1,128], index: 10, kind: input, shape index: {}]
  %s11 = inlined_call_operand.vmem [shape: f32[1,64], index: 11, kind: input, shape index: {}]
  %s12 = inlined_call_operand.vmem [shape: f32[16,64], index: 12, kind: output, shape index: {}]
  %s13 = sld [smem:[#allocation0]]
  $region58: #{_forward.1} parent=0
    _
  %s15 = ssub.s32 1, %s13
  %s16 = scalar_select 0, %s15, %s13
  // Predicated region
  $region2: #{_forward.1} parent=0 // pred_check
    _
  $region3: #{_forward.1} parent=0 // pred_check_branch
    %18 = sbr.rel (0) target = $region5
  $region4: #{_forward.1} parent=0 // pred_region
    _
  $region5: #{_forward.1} parent=0 // pred_fallthru
    _
  // Predicated region
  $region6: #{_forward.1} parent=0 // pred_check
    _
  $region7: #{_forward.1} parent=0 // pred_check_branch
    %20 = sbr.rel (0) target = $region9
  $region8: #{_forward.1} parent=0 // pred_region
    _
  $region9: #{_forward.1} parent=0 // pred_fallthru
    _
  // Predicated region
  $region10: #{_forward.1} parent=0 // pred_check
    _
  $region11: #{_forward.1} parent=0 // pred_check_branch
    %22 = sbr.rel (0) target = $region13
  $region12: #{_forward.1} parent=0 // pred_region
    _
  $region13: #{_forward.1} parent=0 // pred_fallthru
    _
  // Predicated region
  $region14: #{_forward.1} parent=0 // pred_check
    _
  $region15: #{_forward.1} parent=0 // pred_check_branch
    %24 = sbr.rel (0) target = $region17
  $region16: #{_forward.1} parent=0 // pred_region
    _
  $region17: #{_forward.1} parent=0 // pred_fallthru
    _
  // Predicated region
  $region18: #{_forward.1} parent=0 // pred_check
    _
  $region19: #{_forward.1} parent=0 // pred_check_branch
    %26 = sbr.rel (0) target = $region21
  $region20: #{_forward.1} parent=0 // pred_region
    _
  $region21: #{_forward.1} parent=0 // pred_fallthru
    _
  // Predicated region
  $region22: #{_forward.1} parent=0 // pred_check
    _
  $region23: #{_forward.1} parent=0 // pred_check_branch
    %28 = sbr.rel (0) target = $region25
  $region24: #{_forward.1} parent=0 // pred_region
    _
  $region25: #{_forward.1} parent=0 // pred_fallthru
    _
  // Predicated region
  $region26: #{_forward.1} parent=0 // pred_check
    _
  $region27: #{_forward.1} parent=0 // pred_check_branch
    %30 = sbr.rel (0) target = $region29
  $region28: #{_forward.1} parent=0 // pred_region
    _
  $region29: #{_forward.1} parent=0 // pred_fallthru
    _
  // Predicated region
  $region30: #{_forward.1} parent=0 // pred_check
    _
  $region31: #{_forward.1} parent=0 // pred_check_branch
    %32 = sbr.rel (0) target = $region33
  $region32: #{_forward.1} parent=0 // pred_region
    _
  $region33: #{_forward.1} parent=0 // pred_fallthru
    _
  // Predicated region
  $region34: #{_forward.1} parent=0 // pred_check
    _
  $region35: #{_forward.1} parent=0 // pred_check_branch
    %34 = sbr.rel (0) target = $region37
  $region36: #{_forward.1} parent=0 // pred_region
    _
  $region37: #{_forward.1} parent=0 // pred_fallthru
    _
  // Predicated region
  $region38: #{_forward.1} parent=0 // pred_check
    _
  $region39: #{_forward.1} parent=0 // pred_check_branch
    %36 = sbr.rel (0) target = $region41
  $region40: #{_forward.1} parent=0 // pred_region
    _
  $region41: #{_forward.1} parent=0 // pred_fallthru
    _
  // Predicated region
  $region42: #{_forward.1} parent=0 // pred_check
    _
  $region43: #{_forward.1} parent=0 // pred_check_branch
    %38 = sbr.rel (0) target = $region45
  $region44: #{_forward.1} parent=0 // pred_region
    _
  $region45: #{_forward.1} parent=0 // pred_fallthru
    _
  // Predicated region
  $region46: #{_forward.1} parent=0 // pred_check
    _
  $region47: #{_forward.1} parent=0 // pred_check_branch
    %40 = sbr.rel (0) target = $region49
  $region48: #{_forward.1} parent=0 // pred_region
    _
  $region49: #{_forward.1} parent=0 // pred_fallthru
    _
  %v42 = vld [vmem:[%s0] sm:$0xff]
  %v43 = vld [vmem:[%s0 + $0x8] sm:$0xff]
  %v44 = vld [vmem:[%s0 + $0x10] sm:$0xff]
  %v45 = vld [vmem:[%s0 + $0x18] sm:$0xff]
  %v46 = vld [vmem:[%s0 + $0x20] sm:$0xf]
  %vm50 = vcmask 1046528
  %v51 = vrot.slane %v42, 1
  %v52 = vrot.slane %v43, 1
  %v53 = vsel %vm50, %v51, %v52
  %v54 = vrot.slane %v44, 1
  %v55 = vsel %vm50, %v52, %v54
  %56 = vrot.lane.b32.xlu0 %v53, 64
  %v57 = vpop.permute.xlu0 %56
  %58 = vrot.lane.b32.xlu0 %v55, 64
  %v59 = vpop.permute.xlu0 %58
  %vm62 = vcmask 1045504
  %v63 = vrot.slane %v42, 2
  %v64 = vrot.slane %v43, 2
  %v65 = vsel %vm62, %v63, %v64
  %v66 = vrot.slane %v44, 2
  %v67 = vsel %vm62, %v64, %v66
  %vm70 = vcmask 523264
  %v71 = vsel %vm70, %v42, %v57
  %v72 = vsel %vm70, %v43, %v59
  %v75 = vrot.slane %v45, 1
  %v76 = vsel %vm50, %v54, %v75
  %v77 = vrot.slane %v46, 1
  %v78 = vsel %vm50, %v75, %v77
  %79 = vrot.lane.b32.xlu0 %v76, 64
  %v80 = vpop.permute.xlu0 %79
  %81 = vrot.lane.b32.xlu0 %v78, 64
  %v82 = vpop.permute.xlu0 %81
  %83 = vrot.lane.b32.xlu0 %v77, 64
  %v84 = vpop.permute.xlu0 %83
  %v88 = vrot.slane %v45, 2
  %v89 = vsel %vm62, %v66, %v88
  %v90 = vrot.slane %v46, 2
  %v91 = vsel %vm62, %v88, %v90
  %v92 = vsel %vm70, %v44, %v80
  %v93 = vsel %vm70, %v45, %v82
  %v94 = vsel %vm70, %v46, %v84
  %v98 = vrot.slane %v92, 2
  %v99 = vrot.slane %v93, 2
  %v100 = vsel %vm62, %v98, %v99
  %v101 = vrot.slane %v89, 2
  %v102 = vrot.slane %v91, 2
  %v103 = vsel %vm62, %v101, %v102
  %v104 = vrot.slane %v94, 2
  %v105 = vsel %vm62, %v99, %v104
  %v106 = vrot.slane %v90, 2
  %v107 = vsel %vm62, %v102, %v106
  %v112 = vpack.c.bf16 %v72, %v71
  %v113 = vpack.c.bf16 %v67, %v65
  %v114 = vpack.c.bf16 %v105, %v100
  %v115 = vpack.c.bf16 %v107, %v103
  %v116 = vld [vmem:[%s1] sm:$0xff]
  %v117 = vld [vmem:[%s1 + $0x8] sm:$0xff]
  %v118 = vld [vmem:[%s1 + $0x10] sm:$0xff]
  %v119 = vld [vmem:[%s1 + $0x18] sm:$0xff]
  %v120 = vld [vmem:[%s1 + $0x20] sm:$0xff]
  %v121 = vld [vmem:[%s1 + $0x28] sm:$0xff]
  %v122 = vld [vmem:[%s1 + $0x30] sm:$0xff]
  %v123 = vld [vmem:[%s1 + $0x38] sm:$0xff]
  %v124 = vld [vmem:[%s1 + $0x40] sm:$0xff]
  %v125 = vld [vmem:[%s1 + $0x48] sm:$0xff]
  %v126 = vld [vmem:[%s1 + $0x50] sm:$0xff]
  %v127 = vld [vmem:[%s1 + $0x58] sm:$0xff]
  %v128 = vld [vmem:[%s1 + $0x60] sm:$0xff]
  %v129 = vld [vmem:[%s1 + $0x68] sm:$0xff]
  %v130 = vld [vmem:[%s1 + $0x70] sm:$0xff]
  %v131 = vld [vmem:[%s1 + $0x78] sm:$0xff]
  %v132 = vld [vmem:[%s1 + $0x80] sm:$0xff]
  %v133 = vld [vmem:[%s1 + $0x88] sm:$0xff]
  %v134 = vld [vmem:[%s1 + $0x90] sm:$0xff]
  %v135 = vld [vmem:[%s1 + $0x98] sm:$0xff]
  %v136 = vld [vmem:[%s1 + $0xa0] sm:$0xff]
  %v137 = vld [vmem:[%s1 + $0xa8] sm:$0xff]
  %v138 = vld [vmem:[%s1 + $0xb0] sm:$0xff]
  %v139 = vld [vmem:[%s1 + $0xb8] sm:$0xff]
  %v164 = vunpack.c.l.b16 %v116
  %v165 = vunpack.c.h.b16 %v116
  %v166 = vunpack.c.l.b16 %v117
  %v167 = vunpack.c.h.b16 %v117
  %v168 = vunpack.c.l.b16 %v118
  %v169 = vunpack.c.h.b16 %v118
  %v170 = vunpack.c.l.b16 %v119
  %v171 = vunpack.c.h.b16 %v119
  %v172 = vunpack.c.l.b16 %v120
  %v173 = vunpack.c.h.b16 %v120
  %v174 = vunpack.c.l.b16 %v121
  %v175 = vunpack.c.h.b16 %v121
  %v176 = vunpack.c.l.b16 %v122
  %v177 = vunpack.c.h.b16 %v122
  %v178 = vunpack.c.l.b16 %v123
  %v179 = vunpack.c.h.b16 %v123
  %v180 = vunpack.c.l.b16 %v124
  %v181 = vunpack.c.h.b16 %v124
  %v182 = vunpack.c.l.b16 %v125
  %v183 = vunpack.c.h.b16 %v125
  %v184 = vunpack.c.l.b16 %v126
  %v185 = vunpack.c.h.b16 %v126
  %v186 = vunpack.c.l.b16 %v127
  %v187 = vunpack.c.h.b16 %v127
  %v188 = vunpack.c.l.b16 %v128
  %v189 = vunpack.c.h.b16 %v128
  %v190 = vunpack.c.l.b16 %v129
  %v191 = vunpack.c.h.b16 %v129
  %v192 = vunpack.c.l.b16 %v130
  %v193 = vunpack.c.h.b16 %v130
  %v194 = vunpack.c.l.b16 %v131
  %v195 = vunpack.c.h.b16 %v131
  %v196 = vunpack.c.l.b16 %v132
  %v197 = vunpack.c.h.b16 %v132
  %v198 = vunpack.c.l.b16 %v133
  %v199 = vunpack.c.h.b16 %v133
  %v200 = vunpack.c.l.b16 %v134
  %v201 = vunpack.c.h.b16 %v134
  %v202 = vunpack.c.l.b16 %v135
  %v203 = vunpack.c.h.b16 %v135
  %v204 = vunpack.c.l.b16 %v136
  %v205 = vunpack.c.h.b16 %v136
  %v206 = vunpack.c.l.b16 %v137
  %v207 = vunpack.c.h.b16 %v137
  %v208 = vunpack.c.l.b16 %v138
  %v209 = vunpack.c.h.b16 %v138
  %v210 = vunpack.c.l.b16 %v139
  %v211 = vunpack.c.h.b16 %v139
  %v212 = vpack.c.b16 %v166, %v164
  %v213 = vpack.c.b16 %v167, %v165
  %v214 = vpack.c.b16 %v170, %v168
  %v215 = vpack.c.b16 %v171, %v169
  %v216 = vpack.c.b16 %v174, %v172
  %v217 = vpack.c.b16 %v175, %v173
  %v218 = vpack.c.b16 %v178, %v176
  %v219 = vpack.c.b16 %v179, %v177
  %v220 = vpack.c.b16 %v182, %v180
  %v221 = vpack.c.b16 %v183, %v181
  %v222 = vpack.c.b16 %v186, %v184
  %v223 = vpack.c.b16 %v187, %v185
  %v224 = vpack.c.b16 %v190, %v188
  %v225 = vpack.c.b16 %v191, %v189
  %v226 = vpack.c.b16 %v194, %v192
  %v227 = vpack.c.b16 %v195, %v193
  %v228 = vpack.c.b16 %v198, %v196
  %v229 = vpack.c.b16 %v199, %v197
  %v230 = vpack.c.b16 %v202, %v200
  %v231 = vpack.c.b16 %v203, %v201
  %v232 = vpack.c.b16 %v206, %v204
  %v233 = vpack.c.b16 %v207, %v205
  %v234 = vpack.c.b16 %v210, %v208
  %v235 = vpack.c.b16 %v211, %v209
  %v261 = vsel %vm70, %v113, 0
  %v264 = vsel %vm70, %v115, 0
  %266 = vmatpush.bf16.msra.mxu0 %v226
  %267 = vmatpush.bf16.msra.mxu0 %v224
  %268 = vmatpush.bf16.msra.mxu0 %v222
  %269 = vmatpush.bf16.msra.mxu0 %v220
  %270 = vmatpush.bf16.msra.mxu0 %v218
  %271 = vmatpush.bf16.msra.mxu0 %v216
  %272 = vmatpush.bf16.msra.mxu0 %v214
  %273 = vmatpush.bf16.msra.mxu0 %v212
  %274 = vmatmul.bf16.gmra.mxu0 %v112
  %v275 = vpop.f32.mrf.mxu0
  %v276 = vadd.f32 0.0, %v275
  %v277 = vpop.f32.mrf.mxu0
  %v278 = vadd.f32 0.0, %v277
  %279 = vmatmul.bf16.gmra.mxu0 %v114
  %v280 = vpop.f32.mrf.mxu0
  %v281 = vadd.f32 0.0, %v280
  %v282 = vpop.f32.mrf.mxu0
  %v283 = vadd.f32 0.0, %v282
  %284 = vdwg.mxu0
  %285 = vmatpush.bf16.msra.mxu0 0
  %286 = vmatpush.bf16.msra.mxu0 0
  %287 = vmatpush.bf16.msra.mxu0 0
  %288 = vmatpush.bf16.msra.mxu0 0
  %289 = vmatpush.bf16.msra.mxu0 %v234
  %290 = vmatpush.bf16.msra.mxu0 %v232
  %291 = vmatpush.bf16.msra.mxu0 %v230
  %292 = vmatpush.bf16.msra.mxu0 %v228
  %293 = vmatmul.bf16.gmra.mxu0 %v261
  %v294 = vpop.f32.mrf.mxu0
  %v295 = vadd.f32 %v276, %v294
  %v296 = vpop.f32.mrf.mxu0
  %v297 = vadd.f32 %v278, %v296
  %298 = vmatmul.bf16.gmra.mxu0 %v264
  %v299 = vpop.f32.mrf.mxu0
  %v300 = vadd.f32 %v281, %v299
  %v301 = vpop.f32.mrf.mxu0
  %v302 = vadd.f32 %v283, %v301
  %303 = vdwg.mxu0
  %304 = vmatpush.bf16.msra.mxu0 %v227
  %305 = vmatpush.bf16.msra.mxu0 %v225
  %306 = vmatpush.bf16.msra.mxu0 %v223
  %307 = vmatpush.bf16.msra.mxu0 %v221
  %308 = vmatpush.bf16.msra.mxu0 %v219
  %309 = vmatpush.bf16.msra.mxu0 %v217
  %310 = vmatpush.bf16.msra.mxu0 %v215
  %311 = vmatpush.bf16.msra.mxu0 %v213
  %312 = vmatmul.bf16.gmra.mxu0 %v112
  %v313 = vpop.f32.mrf.mxu0
  %v314 = vadd.f32 0.0, %v313
  %v315 = vpop.f32.mrf.mxu0
  %v316 = vadd.f32 0.0, %v315
  %317 = vmatmul.bf16.gmra.mxu0 %v114
  %v318 = vpop.f32.mrf.mxu0
  %v319 = vadd.f32 0.0, %v318
  %v320 = vpop.f32.mrf.mxu0
  %v321 = vadd.f32 0.0, %v320
  %322 = vdwg.mxu0
  %323 = vmatpush.bf16.msra.mxu0 0
  %324 = vmatpush.bf16.msra.mxu0 0
  %325 = vmatpush.bf16.msra.mxu0 0
  %326 = vmatpush.bf16.msra.mxu0 0
  %327 = vmatpush.bf16.msra.mxu0 %v235
  %328 = vmatpush.bf16.msra.mxu0 %v233
  %329 = vmatpush.bf16.msra.mxu0 %v231
  %330 = vmatpush.bf16.msra.mxu0 %v229
  %331 = vmatmul.bf16.gmra.mxu0 %v261
  %v332 = vpop.f32.mrf.mxu0
  %v333 = vadd.f32 %v314, %v332
  %v334 = vpop.f32.mrf.mxu0
  %v335 = vadd.f32 %v316, %v334
  %336 = vmatmul.bf16.gmra.mxu0 %v264
  %v337 = vpop.f32.mrf.mxu0
  %v338 = vadd.f32 %v319, %v337
  %v339 = vpop.f32.mrf.mxu0
  %v340 = vadd.f32 %v321, %v339
  %341 = vdwg.mxu0
  %v342 = vld [vmem:[%s10] sm:$0x1]
  %v344 = vperm.slane %v342, 0
  %v346 = vadd.f32 %v333, %v344
  %v347 = vadd.f32 %v335, %v344
  %v348 = vadd.f32 %v338, %v344
  %v349 = vadd.f32 %v340, %v344
  %v350 = vld [vmem:[%s6] sm:$0x1]
  %v351 = vld [vmem:[%s7] sm:$0x1]
  %v352 = vadd.f32 %v295, %v297
  %v353 = vadd.f32 %v352, %v300
  %v354 = vadd.f32 %v353, %v302
  %v355 = vrot.slane %v354, 4
  %v356 = vadd.f32 %v354, %v355
  %v357 = vrot.slane %v356, 2
  %v358 = vadd.f32 %v356, %v357
  %v359 = vrot.slane %v358, 1
  %v360 = vadd.f32 %v358, %v359
  %v361 = vmul.f32 %v295, %v295
  %v362 = vmul.f32 %v297, %v297
  %v363 = vmul.f32 %v300, %v300
  %v364 = vmul.f32 %v302, %v302
  %v365 = vadd.f32 %v361, %v362
  %v366 = vadd.f32 %v365, %v363
  %v367 = vadd.f32 %v366, %v364
  %v368 = vrot.slane %v367, 4
  %v369 = vadd.f32 %v367, %v368
  %v370 = vrot.slane %v369, 2
  %v371 = vadd.f32 %v369, %v370
  %v372 = vrot.slane %v371, 1
  %v373 = vadd.f32 %v371, %v372
  %v374 = vld [vmem:[%s5] sm:$0xff]
  %v375 = vld [vmem:[%s5 + $0x8] sm:$0xff]
  %v376 = vld [vmem:[%s5 + $0x10] sm:$0xff]
  %v377 = vld [vmem:[%s5 + $0x18] sm:$0xff]
  %v378 = vld [vmem:[%s5 + $0x20] sm:$0xff]
  %v379 = vld [vmem:[%s5 + $0x28] sm:$0xff]
  %v380 = vld [vmem:[%s5 + $0x30] sm:$0xff]
  %v381 = vld [vmem:[%s5 + $0x38] sm:$0xff]
  %v382 = vld [vmem:[%s5 + $0x40] sm:$0xff]
  %v383 = vld [vmem:[%s5 + $0x48] sm:$0xff]
  %v384 = vld [vmem:[%s5 + $0x50] sm:$0xff]
  %v385 = vld [vmem:[%s5 + $0x58] sm:$0xff]
  %v386 = vld [vmem:[%s5 + $0x60] sm:$0xff]
  %v387 = vld [vmem:[%s5 + $0x68] sm:$0xff]
  %v388 = vld [vmem:[%s5 + $0x70] sm:$0xff]
  %v389 = vld [vmem:[%s5 + $0x78] sm:$0xff]
  %390 = vmatpush.msra.mxu0 %v389
  %391 = vmatpush.msra.mxu0 %v388
  %392 = vmatpush.msra.mxu0 %v387
  %393 = vmatpush.msra.mxu0 %v386
  %394 = vmatpush.msra.mxu0 %v385
  %395 = vmatpush.msra.mxu0 %v384
  %396 = vmatpush.msra.mxu0 %v383
  %397 = vmatpush.msra.mxu0 %v382
  %398 = vmatpush.msra.mxu0 %v381
  %399 = vmatpush.msra.mxu0 %v380
  %400 = vmatpush.msra.mxu0 %v379
  %401 = vmatpush.msra.mxu0 %v378
  %402 = vmatpush.msra.mxu0 %v377
  %403 = vmatpush.msra.mxu0 %v376
  %404 = vmatpush.msra.mxu0 %v375
  %405 = vmatpush.msra.mxu0 %v374
  %406 = vmatmul.f32.gmra.mxu0 %v360
  %v407 = vpop.f32.mrf.mxu0
  %v408 = vadd.f32 0.0, %v407
  %409 = vdwg.mxu0
  %410 = vmatpush.msra.mxu0 %v389
  %411 = vmatpush.msra.mxu0 %v388
  %412 = vmatpush.msra.mxu0 %v387
  %413 = vmatpush.msra.mxu0 %v386
  %414 = vmatpush.msra.mxu0 %v385
  %415 = vmatpush.msra.mxu0 %v384
  %416 = vmatpush.msra.mxu0 %v383
  %417 = vmatpush.msra.mxu0 %v382
  %418 = vmatpush.msra.mxu0 %v381
  %419 = vmatpush.msra.mxu0 %v380
  %420 = vmatpush.msra.mxu0 %v379
  %421 = vmatpush.msra.mxu0 %v378
  %422 = vmatpush.msra.mxu0 %v377
  %423 = vmatpush.msra.mxu0 %v376
  %424 = vmatpush.msra.mxu0 %v375
  %425 = vmatpush.msra.mxu0 %v374
  %426 = vmatmul.f32.gmra.mxu0 %v373
  %v427 = vpop.f32.mrf.mxu0
  %v428 = vadd.f32 0.0, %v427
  %429 = vdwg.mxu0
  %v430 = vmul.f32 %v408, %v408
  %v431 = vsub.f32 %v428, %v430
  %v432 = vmax.f32 %v431, 0.0
  %v433 = vadd.f32 %v432, 1e-05
  %v434 = vrsqrt.pop %v433
  %v435 = vmul.f32 %v434, %v433
  %v436 = vmul.f32 %v435, %v434
  %v437 = vmul.f32 0.5, %v436
  %v438 = vsub.f32 1.5, %v437
  %v439 = vmul.f32 %v434, %v438
  %vm440 = vweird.f32 %v433
  %vm441 = vweird.f32 %v434
  %vm442 = vmor %vm440, %vm441
  %v443 = vsel %vm442, %v434, %v439
  %v444 = vmul.f32 %v350, %v443
  %v445 = vmul.f32 %v408, %v444
  %v446 = vsub.f32 %v351, %v445
  %v448 = vperm.slane %v444, 0
  %v450 = vmul.f32 %v295, %v448
  %v451 = vmul.f32 %v297, %v448
  %v452 = vmul.f32 %v300, %v448
  %v453 = vmul.f32 %v302, %v448
  %v455 = vperm.slane %v446, 0
  %v457 = vadd.f32 %v450, %v455
  %v458 = vadd.f32 %v451, %v455
  %v459 = vadd.f32 %v452, %v455
  %v460 = vadd.f32 %v453, %v455
  %vm461 = vcmp.ge.f32.partialorder %v457, 0.0
  %vm462 = vcmp.ge.f32.partialorder %v458, 0.0
  %vm463 = vcmp.ge.f32.partialorder %v459, 0.0
  %vm464 = vcmp.ge.f32.partialorder %v460, 0.0
  %v465 = vmul.f32 %v457, 0.01
  %v466 = vmul.f32 %v458, 0.01
  %v467 = vmul.f32 %v459, 0.01
  %v468 = vmul.f32 %v460, 0.01
  %v469 = vsel %vm461, %v457, %v465
  %v470 = vsel %vm462, %v458, %v466
  %v471 = vsel %vm463, %v459, %v467
  %v472 = vsel %vm464, %v460, %v468
  %v475 = vrot.slane %v469, 1
  %v476 = vrot.slane %v470, 1
  %v477 = vsel %vm50, %v475, %v476
  %v479 = vrot.slane %v469, 2
  %v480 = vrot.slane %v470, 2
  %v481 = vsel %vm62, %v479, %v480
  %v482 = vrot.slane 0.0, 2
  %v483 = vsel %vm62, %v480, %v482
  %v486 = vrot.slane %v471, 1
  %v487 = vrot.slane %v472, 1
  %v488 = vsel %vm50, %v486, %v487
  %v489 = vrot.slane %v471, 2
  %v490 = vrot.slane %v472, 2
  %v491 = vsel %vm62, %v489, %v490
  %v492 = vsel %vm62, %v490, %v482
  %vm493 = vcmask 1040384
  %v494 = vrot.slane 0.0, 7
  %v495 = vrot.slane %v469, 7
  %v496 = vsel %vm493, %v494, %v495
  %v497 = vrot.slane %v475, 7
  %v498 = vrot.slane %v477, 7
  %v499 = vsel %vm493, %v497, %v498
  %v500 = vrot.slane %v479, 7
  %v501 = vrot.slane %v481, 7
  %v502 = vsel %vm493, %v500, %v501
  %v503 = vrot.slane %v470, 7
  %v504 = vsel %vm493, %v495, %v503
  %v505 = vrot.slane %v476, 7
  %v506 = vsel %vm493, %v498, %v505
  %v507 = vrot.slane %v483, 7
  %v508 = vsel %vm493, %v501, %v507
  %v515 = vrot.slane %v471, 7
  %v516 = vsel %vm493, %v494, %v515
  %v517 = vrot.slane %v486, 7
  %v518 = vrot.slane %v488, 7
  %v519 = vsel %vm493, %v517, %v518
  %v520 = vrot.slane %v489, 7
  %v521 = vrot.slane %v491, 7
  %v522 = vsel %vm493, %v520, %v521
  %v523 = vrot.slane %v472, 7
  %v524 = vsel %vm493, %v515, %v523
  %v525 = vrot.slane %v487, 7
  %v526 = vsel %vm493, %v518, %v525
  %v527 = vrot.slane %v492, 7
  %v528 = vsel %vm493, %v521, %v527
  %v535 = vpack.c.bf16 %v504, %v496
  %v536 = vpack.c.bf16 %v506, %v499
  %v537 = vpack.c.bf16 %v508, %v502
  %v538 = vpack.c.bf16 %v524, %v516
  %v539 = vpack.c.bf16 %v526, %v519
  %v540 = vpack.c.bf16 %v528, %v522
  %v541 = vld [vmem:[%s2] sm:$0xf]
  %v542 = vld [vmem:[%s2 + $0x4] sm:$0xf]
  %v543 = vld [vmem:[%s2 + $0x8] sm:$0xf]
  %v544 = vld [vmem:[%s2 + $0xc] sm:$0xf]
  %v545 = vld [vmem:[%s2 + $0x10] sm:$0xf]
  %v546 = vld [vmem:[%s2 + $0x14] sm:$0xf]
  %v547 = vld [vmem:[%s2 + $0x18] sm:$0xf]
  %v548 = vld [vmem:[%s2 + $0x1c] sm:$0xf]
  %v549 = vld [vmem:[%s2 + $0x20] sm:$0xf]
  %v550 = vld [vmem:[%s2 + $0x24] sm:$0xf]
  %v551 = vld [vmem:[%s2 + $0x28] sm:$0xf]
  %v552 = vld [vmem:[%s2 + $0x2c] sm:$0xf]
  %v553 = vld [vmem:[%s2 + $0x30] sm:$0xf]
  %v554 = vld [vmem:[%s2 + $0x34] sm:$0xf]
  %v555 = vld [vmem:[%s2 + $0x38] sm:$0xf]
  %v556 = vld [vmem:[%s2 + $0x3c] sm:$0xf]
  %v557 = vld [vmem:[%s2 + $0x40] sm:$0xf]
  %v558 = vld [vmem:[%s2 + $0x44] sm:$0xf]
  %v559 = vld [vmem:[%s2 + $0x48] sm:$0xf]
  %v560 = vld [vmem:[%s2 + $0x4c] sm:$0xf]
  %v561 = vld [vmem:[%s2 + $0x50] sm:$0xf]
  %v562 = vld [vmem:[%s2 + $0x54] sm:$0xf]
  %v563 = vld [vmem:[%s2 + $0x58] sm:$0xf]
  %v564 = vld [vmem:[%s2 + $0x5c] sm:$0xf]
  %v565 = vld [vmem:[%s2 + $0x60] sm:$0xf]
  %v566 = vld [vmem:[%s2 + $0x64] sm:$0xf]
  %v567 = vld [vmem:[%s2 + $0x68] sm:$0xf]
  %v568 = vld [vmem:[%s2 + $0x6c] sm:$0xf]
  %v569 = vld [vmem:[%s2 + $0x70] sm:$0xf]
  %v570 = vld [vmem:[%s2 + $0x74] sm:$0xf]
  %v571 = vld [vmem:[%s2 + $0x78] sm:$0xf]
  %v572 = vld [vmem:[%s2 + $0x7c] sm:$0xf]
  %v573 = vld [vmem:[%s2 + $0x80] sm:$0xf]
  %v574 = vld [vmem:[%s2 + $0x84] sm:$0xf]
  %v575 = vld [vmem:[%s2 + $0x88] sm:$0xf]
  %v576 = vld [vmem:[%s2 + $0x8c] sm:$0xf]
  %v577 = vld [vmem:[%s2 + $0x90] sm:$0xf]
  %v578 = vld [vmem:[%s2 + $0x94] sm:$0xf]
  %v579 = vld [vmem:[%s2 + $0x98] sm:$0xf]
  %v580 = vld [vmem:[%s2 + $0x9c] sm:$0xf]
  %v581 = vld [vmem:[%s2 + $0xa0] sm:$0xf]
  %v582 = vld [vmem:[%s2 + $0xa4] sm:$0xf]
  %v583 = vld [vmem:[%s2 + $0xa8] sm:$0xf]
  %v584 = vld [vmem:[%s2 + $0xac] sm:$0xf]
  %v585 = vld [vmem:[%s2 + $0xb0] sm:$0xf]
  %v586 = vld [vmem:[%s2 + $0xb4] sm:$0xf]
  %v587 = vld [vmem:[%s2 + $0xb8] sm:$0xf]
  %v588 = vld [vmem:[%s2 + $0xbc] sm:$0xf]
  %v637 = vunpack.c.l.b16 %v541
  %v638 = vunpack.c.l.b16 %v542
  %v639 = vunpack.c.l.b16 %v543
  %v640 = vunpack.c.l.b16 %v544
  %v641 = vunpack.c.l.b16 %v545
  %v642 = vunpack.c.l.b16 %v546
  %v643 = vunpack.c.l.b16 %v547
  %v644 = vunpack.c.l.b16 %v548
  %v645 = vunpack.c.l.b16 %v549
  %v646 = vunpack.c.l.b16 %v550
  %v647 = vunpack.c.l.b16 %v551
  %v648 = vunpack.c.l.b16 %v552
  %v649 = vunpack.c.l.b16 %v553
  %v650 = vunpack.c.l.b16 %v554
  %v651 = vunpack.c.l.b16 %v555
  %v652 = vunpack.c.l.b16 %v556
  %v653 = vunpack.c.l.b16 %v557
  %v654 = vunpack.c.l.b16 %v558
  %v655 = vunpack.c.l.b16 %v559
  %v656 = vunpack.c.l.b16 %v560
  %v657 = vunpack.c.l.b16 %v561
  %v658 = vunpack.c.l.b16 %v562
  %v659 = vunpack.c.l.b16 %v563
  %v660 = vunpack.c.l.b16 %v564
  %v661 = vunpack.c.l.b16 %v565
  %v662 = vunpack.c.l.b16 %v566
  %v663 = vunpack.c.l.b16 %v567
  %v664 = vunpack.c.l.b16 %v568
  %v665 = vunpack.c.l.b16 %v569
  %v666 = vunpack.c.l.b16 %v570
  %v667 = vunpack.c.l.b16 %v571
  %v668 = vunpack.c.l.b16 %v572
  %v669 = vunpack.c.l.b16 %v573
  %v670 = vunpack.c.l.b16 %v574
  %v671 = vunpack.c.l.b16 %v575
  %v672 = vunpack.c.l.b16 %v576
  %v673 = vunpack.c.l.b16 %v577
  %v674 = vunpack.c.l.b16 %v578
  %v675 = vunpack.c.l.b16 %v579
  %v676 = vunpack.c.l.b16 %v580
  %v677 = vunpack.c.l.b16 %v581
  %v678 = vunpack.c.l.b16 %v582
  %v679 = vunpack.c.l.b16 %v583
  %v680 = vunpack.c.l.b16 %v584
  %v681 = vunpack.c.l.b16 %v585
  %v682 = vunpack.c.l.b16 %v586
  %v683 = vunpack.c.l.b16 %v587
  %v684 = vunpack.c.l.b16 %v588
  %v685 = vpack.c.b16 %v638, %v637
  %v686 = vpack.c.b16 %v640, %v639
  %v687 = vpack.c.b16 %v642, %v641
  %v688 = vpack.c.b16 %v644, %v643
  %v689 = vpack.c.b16 %v646, %v645
  %v690 = vpack.c.b16 %v648, %v647
  %v691 = vpack.c.b16 %v650, %v649
  %v692 = vpack.c.b16 %v652, %v651
  %v693 = vpack.c.b16 %v654, %v653
  %v694 = vpack.c.b16 %v656, %v655
  %v695 = vpack.c.b16 %v658, %v657
  %v696 = vpack.c.b16 %v660, %v659
  %v697 = vpack.c.b16 %v662, %v661
  %v698 = vpack.c.b16 %v664, %v663
  %v699 = vpack.c.b16 %v666, %v665
  %v700 = vpack.c.b16 %v668, %v667
  %v701 = vpack.c.b16 %v670, %v669
  %v702 = vpack.c.b16 %v672, %v671
  %v703 = vpack.c.b16 %v674, %v673
  %v704 = vpack.c.b16 %v676, %v675
  %v705 = vpack.c.b16 %v678, %v677
  %v706 = vpack.c.b16 %v680, %v679
  %v707 = vpack.c.b16 %v682, %v681
  %v708 = vpack.c.b16 %v684, %v683
  %733 = vmatpush.bf16.msra.mxu0 %v692
  %734 = vmatpush.bf16.msra.mxu0 %v691
  %735 = vmatpush.bf16.msra.mxu0 %v690
  %736 = vmatpush.bf16.msra.mxu0 %v689
  %737 = vmatpush.bf16.msra.mxu0 %v688
  %738 = vmatpush.bf16.msra.mxu0 %v687
  %739 = vmatpush.bf16.msra.mxu0 %v686
  %740 = vmatpush.bf16.msra.mxu0 %v685
  %741 = vmatmul.bf16.gmra.mxu0 %v535
  %v742 = vpop.f32.mrf.mxu0
  %v743 = vadd.f32 0.0, %v742
  %v744 = vpop.f32.mrf.mxu0
  %v745 = vadd.f32 0.0, %v744
  %746 = vmatmul.bf16.gmra.mxu0 %v538
  %v747 = vpop.f32.mrf.mxu0
  %v748 = vadd.f32 0.0, %v747
  %v749 = vpop.f32.mrf.mxu0
  %v750 = vadd.f32 0.0, %v749
  %751 = vdwg.mxu0
  %752 = vmatpush.bf16.msra.mxu0 %v700
  %753 = vmatpush.bf16.msra.mxu0 %v699
  %754 = vmatpush.bf16.msra.mxu0 %v698
  %755 = vmatpush.bf16.msra.mxu0 %v697
  %756 = vmatpush.bf16.msra.mxu0 %v696
  %757 = vmatpush.bf16.msra.mxu0 %v695
  %758 = vmatpush.bf16.msra.mxu0 %v694
  %759 = vmatpush.bf16.msra.mxu0 %v693
  %760 = vmatmul.bf16.gmra.mxu0 %v536
  %v761 = vpop.f32.mrf.mxu0
  %v762 = vadd.f32 %v743, %v761
  %v763 = vpop.f32.mrf.mxu0
  %v764 = vadd.f32 %v745, %v763
  %765 = vmatmul.bf16.gmra.mxu0 %v539
  %v766 = vpop.f32.mrf.mxu0
  %v767 = vadd.f32 %v748, %v766
  %v768 = vpop.f32.mrf.mxu0
  %v769 = vadd.f32 %v750, %v768
  %770 = vdwg.mxu0
  %771 = vmatpush.bf16.msra.mxu0 %v708
  %772 = vmatpush.bf16.msra.mxu0 %v707
  %773 = vmatpush.bf16.msra.mxu0 %v706
  %774 = vmatpush.bf16.msra.mxu0 %v705
  %775 = vmatpush.bf16.msra.mxu0 %v704
  %776 = vmatpush.bf16.msra.mxu0 %v703
  %777 = vmatpush.bf16.msra.mxu0 %v702
  %778 = vmatpush.bf16.msra.mxu0 %v701
  %779 = vmatmul.bf16.gmra.mxu0 %v537
  %v780 = vpop.f32.mrf.mxu0
  %v781 = vadd.f32 %v762, %v780
  %v782 = vpop.f32.mrf.mxu0
  %v783 = vadd.f32 %v764, %v782
  %784 = vmatmul.bf16.gmra.mxu0 %v540
  %v785 = vpop.f32.mrf.mxu0
  %v786 = vadd.f32 %v767, %v785
  %v787 = vpop.f32.mrf.mxu0
  %v788 = vadd.f32 %v769, %v787
  %789 = vdwg.mxu0
  %v790 = vld [vmem:[%s8] sm:$0x1]
  %v791 = vld [vmem:[%s9] sm:$0x1]
  %v792 = vadd.f32 %v781, %v783
  %v793 = vadd.f32 %v792, %v786
  %v794 = vadd.f32 %v793, %v788
  %v795 = vrot.slane %v794, 4
  %v796 = vadd.f32 %v794, %v795
  %v797 = vrot.slane %v796, 2
  %v798 = vadd.f32 %v796, %v797
  %v799 = vrot.slane %v798, 1
  %v800 = vadd.f32 %v798, %v799
  %v801 = vmul.f32 %v781, %v781
  %v802 = vmul.f32 %v783, %v783
  %v803 = vmul.f32 %v786, %v786
  %v804 = vmul.f32 %v788, %v788
  %v805 = vadd.f32 %v801, %v802
  %v806 = vadd.f32 %v805, %v803
  %v807 = vadd.f32 %v806, %v804
  %v808 = vrot.slane %v807, 4
  %v809 = vadd.f32 %v807, %v808
  %v810 = vrot.slane %v809, 2
  %v811 = vadd.f32 %v809, %v810
  %v812 = vrot.slane %v811, 1
  %v813 = vadd.f32 %v811, %v812
  %814 = vmatpush.msra.mxu0 %v389
  %815 = vmatpush.msra.mxu0 %v388
  %816 = vmatpush.msra.mxu0 %v387
  %817 = vmatpush.msra.mxu0 %v386
  %818 = vmatpush.msra.mxu0 %v385
  %819 = vmatpush.msra.mxu0 %v384
  %820 = vmatpush.msra.mxu0 %v383
  %821 = vmatpush.msra.mxu0 %v382
  %822 = vmatpush.msra.mxu0 %v381
  %823 = vmatpush.msra.mxu0 %v380
  %824 = vmatpush.msra.mxu0 %v379
  %825 = vmatpush.msra.mxu0 %v378
  %826 = vmatpush.msra.mxu0 %v377
  %827 = vmatpush.msra.mxu0 %v376
  %828 = vmatpush.msra.mxu0 %v375
  %829 = vmatpush.msra.mxu0 %v374
  %830 = vmatmul.f32.gmra.mxu0 %v800
  %v831 = vpop.f32.mrf.mxu0
  %v832 = vadd.f32 0.0, %v831
  %833 = vdwg.mxu0
  %834 = vmatpush.msra.mxu0 %v389
  %835 = vmatpush.msra.mxu0 %v388
  %836 = vmatpush.msra.mxu0 %v387
  %837 = vmatpush.msra.mxu0 %v386
  %838 = vmatpush.msra.mxu0 %v385
  %839 = vmatpush.msra.mxu0 %v384
  %840 = vmatpush.msra.mxu0 %v383
  %841 = vmatpush.msra.mxu0 %v382
  %842 = vmatpush.msra.mxu0 %v381
  %843 = vmatpush.msra.mxu0 %v380
  %844 = vmatpush.msra.mxu0 %v379
  %845 = vmatpush.msra.mxu0 %v378
  %846 = vmatpush.msra.mxu0 %v377
  %847 = vmatpush.msra.mxu0 %v376
  %848 = vmatpush.msra.mxu0 %v375
  %849 = vmatpush.msra.mxu0 %v374
  %850 = vmatmul.f32.gmra.mxu0 %v813
  %v851 = vpop.f32.mrf.mxu0
  %v852 = vadd.f32 0.0, %v851
  %853 = vdwg.mxu0
  %v854 = vmul.f32 %v832, %v832
  %v855 = vsub.f32 %v852, %v854
  %v856 = vmax.f32 %v855, 0.0
  %v857 = vadd.f32 %v856, 1e-05
  %v858 = vrsqrt.pop %v857
  %v859 = vmul.f32 %v858, %v857
  %v860 = vmul.f32 %v859, %v858
  %v861 = vmul.f32 0.5, %v860
  %v862 = vsub.f32 1.5, %v861
  %v863 = vmul.f32 %v858, %v862
  %vm864 = vweird.f32 %v857
  %vm865 = vweird.f32 %v858
  %vm866 = vmor %vm864, %vm865
  %v867 = vsel %vm866, %v858, %v863
  %v868 = vmul.f32 %v790, %v867
  %v869 = vmul.f32 %v832, %v868
  %v870 = vsub.f32 %v791, %v869
  %v872 = vperm.slane %v868, 0
  %v874 = vmul.f32 %v781, %v872
  %v875 = vmul.f32 %v783, %v872
  %v876 = vmul.f32 %v786, %v872
  %v877 = vmul.f32 %v788, %v872
  %v879 = vperm.slane %v870, 0
  %v881 = vadd.f32 %v874, %v879
  %v882 = vadd.f32 %v875, %v879
  %v883 = vadd.f32 %v876, %v879
  %v884 = vadd.f32 %v877, %v879
  %vm885 = vcmp.ge.f32.partialorder %v881, 0.0
  %vm886 = vcmp.ge.f32.partialorder %v882, 0.0
  %vm887 = vcmp.ge.f32.partialorder %v883, 0.0
  %vm888 = vcmp.ge.f32.partialorder %v884, 0.0
  %v889 = vmul.f32 %v881, 0.01
  %v890 = vmul.f32 %v882, 0.01
  %v891 = vmul.f32 %v883, 0.01
  %v892 = vmul.f32 %v884, 0.01
  %v893 = vsel %vm885, %v881, %v889
  %v894 = vsel %vm886, %v882, %v890
  %v895 = vsel %vm887, %v883, %v891
  %v896 = vsel %vm888, %v884, %v892
  %v897 = vadd.f32 %v893, %v346
  %v898 = vadd.f32 %v894, %v347
  %v899 = vadd.f32 %v895, %v348
  %v900 = vadd.f32 %v896, %v349
  %v901 = vpack.c.bf16 %v898, %v897
  %v902 = vpack.c.bf16 %v900, %v899
  %v903 = vld [vmem:[%s3] sm:$0xf]
  %v904 = vld [vmem:[%s3 + $0x4] sm:$0xf]
  %v905 = vld [vmem:[%s3 + $0x8] sm:$0xf]
  %v906 = vld [vmem:[%s3 + $0xc] sm:$0xf]
  %v907 = vld [vmem:[%s3 + $0x10] sm:$0xf]
  %v908 = vld [vmem:[%s3 + $0x14] sm:$0xf]
  %v909 = vld [vmem:[%s3 + $0x18] sm:$0xf]
  %v910 = vld [vmem:[%s3 + $0x1c] sm:$0xf]
  %v911 = vld [vmem:[%s3 + $0x20] sm:$0xf]
  %v912 = vld [vmem:[%s3 + $0x24] sm:$0xf]
  %v913 = vld [vmem:[%s3 + $0x28] sm:$0xf]
  %v914 = vld [vmem:[%s3 + $0x2c] sm:$0xf]
  %v915 = vld [vmem:[%s3 + $0x30] sm:$0xf]
  %v916 = vld [vmem:[%s3 + $0x34] sm:$0xf]
  %v917 = vld [vmem:[%s3 + $0x38] sm:$0xf]
  %v918 = vld [vmem:[%s3 + $0x3c] sm:$0xf]
  %v935 = vunpack.c.l.b16 %v903
  %v936 = vunpack.c.l.b16 %v904
  %v937 = vunpack.c.l.b16 %v905
  %v938 = vunpack.c.l.b16 %v906
  %v939 = vunpack.c.l.b16 %v907
  %v940 = vunpack.c.l.b16 %v908
  %v941 = vunpack.c.l.b16 %v909
  %v942 = vunpack.c.l.b16 %v910
  %v943 = vunpack.c.l.b16 %v911
  %v944 = vunpack.c.l.b16 %v912
  %v945 = vunpack.c.l.b16 %v913
  %v946 = vunpack.c.l.b16 %v914
  %v947 = vunpack.c.l.b16 %v915
  %v948 = vunpack.c.l.b16 %v916
  %v949 = vunpack.c.l.b16 %v917
  %v950 = vunpack.c.l.b16 %v918
  %v951 = vpack.c.b16 %v936, %v935
  %v952 = vpack.c.b16 %v938, %v937
  %v953 = vpack.c.b16 %v940, %v939
  %v954 = vpack.c.b16 %v942, %v941
  %v955 = vpack.c.b16 %v944, %v943
  %v956 = vpack.c.b16 %v946, %v945
  %v957 = vpack.c.b16 %v948, %v947
  %v958 = vpack.c.b16 %v950, %v949
  %967 = vmatpush.bf16.msra.mxu0 %v958
  %968 = vmatpush.bf16.msra.mxu0 %v957
  %969 = vmatpush.bf16.msra.mxu0 %v956
  %970 = vmatpush.bf16.msra.mxu0 %v955
  %971 = vmatpush.bf16.msra.mxu0 %v954
  %972 = vmatpush.bf16.msra.mxu0 %v953
  %973 = vmatpush.bf16.msra.mxu0 %v952
  %974 = vmatpush.bf16.msra.mxu0 %v951
  %975 = vmatmul.bf16.gmra.mxu0 %v901
  %v976 = vpop.f32.mrf.mxu0
  %v977 = vadd.f32 0.0, %v976
  %v978 = vpop.f32.mrf.mxu0
  %v979 = vadd.f32 0.0, %v978
  %980 = vmatmul.bf16.gmra.mxu0 %v902
  %v981 = vpop.f32.mrf.mxu0
  %v982 = vadd.f32 0.0, %v981
  %v983 = vpop.f32.mrf.mxu0
  %v984 = vadd.f32 0.0, %v983
  %985 = vdwg.mxu0
  %990 = vrot.lane.b32.xlu0 %v977, 64
  %v991 = vpop.permute.xlu0 %990
  %992 = vrot.lane.b32.xlu0 %v979, 64
  %v993 = vpop.permute.xlu0 %992
  %994 = vrot.lane.b32.xlu0 %v982, 64
  %v995 = vpop.permute.xlu0 %994
  %996 = vrot.lane.b32.xlu0 %v984, 64
  %v997 = vpop.permute.xlu0 %996
  %v1002 = vld [vmem:[%s4] sm:$0xff]
  %v1003 = vld [vmem:[%s4 + $0x8] sm:$0xff]
  %v1004 = vld [vmem:[%s11] sm:$0x1]
  %v1006 = vperm.slane %v1004, 0
  %v1009 = vsel %vm70, %v1002, 0
  %v1012 = vsel %vm70, %v1003, 0
  %1014 = vmatpush.msra.mxu0 0.0
  %1015 = vmatpush.msra.mxu0 0.0
  %1016 = vmatpush.msra.mxu0 0.0
  %1017 = vmatpush.msra.mxu0 0.0
  %1018 = vmatpush.msra.mxu0 0.0
  %1019 = vmatpush.msra.mxu0 0.0
  %1020 = vmatpush.msra.mxu0 0.0
  %1021 = vmatpush.msra.mxu0 0.0
  %1022 = vmatpush.msra.mxu0 %v997
  %1023 = vmatpush.msra.mxu0 %v995
  %1024 = vmatpush.msra.mxu0 %v993
  %1025 = vmatpush.msra.mxu0 %v991
  %1026 = vmatpush.msra.mxu0 %v984
  %1027 = vmatpush.msra.mxu0 %v982
  %1028 = vmatpush.msra.mxu0 %v979
  %1029 = vmatpush.msra.mxu0 %v977
  %1030 = vmatmul.f32.gmra.mxu0 %v1009
  %v1031 = vpop.f32.mrf.mxu0
  %v1032 = vadd.f32 %v1006, %v1031
  %1033 = vmatmul.f32.gmra.mxu0 %v1012
  %v1034 = vpop.f32.mrf.mxu0
  %v1035 = vadd.f32 %v1006, %v1034
  %1036 = vdwg.mxu0
  %1037 = vst.msk [vmem:[%s12] sm:$0xff] %vm70, %v1032
  %1038 = vst.msk [vmem:[%s12 + $0x8] sm:$0xff] %vm70, %v1035
  // Predicated region
  $region50: #{_forward.1} parent=0 // pred_check
    _
  $region51: #{_forward.1} parent=0 // pred_check_branch
    %1040 = sbr.rel (0) target = $region53
  $region52: #{_forward.1} parent=0 // pred_region
    _
  $region53: #{_forward.1} parent=0 // pred_fallthru
    _
  // Predicated region
  $region54: #{_forward.1} parent=0 // pred_check
    _
  $region55: #{_forward.1} parent=0 // pred_check_branch
    %1042 = sbr.rel (0) target = $region57
  $region56: #{_forward.1} parent=0 // pred_region
    _
  $region57: #{_forward.1} parent=0 // pred_fallthru
    _

</llo_original>
